<compile_context>
chip_gen: v7x
topology: tpu7x:2x2x1
jax: 0.10.0
libtpu: 0.0.40
codegen_flags: <defaults>
</compile_context>

<pallas_src>
import jax
import jax.numpy as jnp
from jax.experimental import pallas as pl
from jax.experimental.pallas import tpu as pltpu


def _copy_kernel(x_ref, o_ref):
    # Tiled path: identical block shapes in/out; the chomp lives entirely in the grid,
    # so the body is a bare vld->vst copy and the chomped tail is never DMA'd.
    o_ref[...] = x_ref[...]


def _slice_kernel(x_ref, o_ref):
    # Fallback path (L_out < 128): static slice of the lane axis.
    o_ref[...] = x_ref[:, : o_ref.shape[-1]]


def _round_up(v, m):
    return ((v + m - 1) // m) * m


def _sublane_pack(dtype) -> int:
    # Sublane packing: 8 rows for 4-byte, 16 for 2-byte, 32 for 1-byte dtypes.
    return 32 // jnp.dtype(dtype).itemsize


def chomp1d(x, chomp_size, *, max_tl=2048, max_block_bytes=4 * 1024 * 1024,
            min_parallel_steps=8):
    """Removes the last `chomp_size` elements along the last axis of (B, C, L).

    Per-generation tuning: max_block_bytes ~8 MiB is fine on v6e (128 MiB VMEM);
    keep it at ~4 MiB on v7x (64 MiB physical VMEM) and v5e (16 MiB scoped default).
    """
    B, C, L = x.shape
    if chomp_size == 0:
        # "Remove zero elements" identity (torch's `[:, :, :-0]` empty-slice is a bug).
        return x
    assert 0 < chomp_size < L, "chomp_size must be in [0, L)"
    L_out = L - chomp_size
    R = B * C
    itemsize = jnp.dtype(x.dtype).itemsize
    pack = _sublane_pack(x.dtype)

    # Collapse (B, C) into one contiguous row axis: free (row-major) reshape in & out.
    x2 = x.reshape(R, L)

    # Advisory only: edge tiles over-read < 128 extra lanes per row.
    cost = pl.CostEstimate(
        flops=0, transcendentals=0, bytes_accessed=2 * R * L_out * itemsize
    )

    if L_out >= 128:
        # ---- Tiled path: chomp expressed via the grid over output lane tiles. ----
        # Balanced lane tiles (multiples of 128): no nearly-all-masked edge tile.
        max_tl_lanes = max(128, (max_tl // 128) * 128)
        n_l = pl.cdiv(L_out, max_tl_lanes)
        tl = _round_up(pl.cdiv(L_out, n_l), 128)
        n_l = pl.cdiv(L_out, tl)

        # Row tile: whole R if it fits the per-buffer budget, else a pack multiple.
        max_tr = max(pack, max_block_bytes // (tl * itemsize))
        tr = R if R <= max_tr else (max_tr // pack) * pack
        n_r = pl.cdiv(R, tr)

        # Keep enough parallel steps for v7x's two TensorCores: split the lane axis
        # further (tiles stay >= 128 wide) rather than run a 1-2 step grid.
        if n_r * n_l < min_parallel_steps:
            want_l = min(pl.cdiv(min_parallel_steps, n_r), max(1, L_out // 128))
            if want_l > n_l:
                tl = _round_up(pl.cdiv(L_out, want_l), 128)
                n_l = pl.cdiv(L_out, tl)

        block_bytes = tr * tl * itemsize
        # 2 arrays x 2 pipeline buffers x block + slack; floor at 16 MiB (v5e default).
        vmem_limit = max(16 << 20, 4 * block_bytes + (2 << 20))

        idx = lambda r, l: (r, l)  # same map for in & out -> tail never read
        out2 = pl.pallas_call(
            _copy_kernel,
            out_shape=jax.ShapeDtypeStruct((R, L_out), x.dtype),
            grid_spec=pltpu.PrefetchScalarGridSpec(
                num_scalar_prefetch=0,
                grid=(n_r, n_l),
                in_specs=[pl.BlockSpec((tr, tl), idx)],
                out_specs=pl.BlockSpec((tr, tl), idx),
            ),
            compiler_params=pltpu.CompilerParams(
                dimension_semantics=("parallel", "parallel"),
                vmem_limit_bytes=int(vmem_limit),
            ),
            cost_estimate=cost,
        )(x2)
        return out2.reshape(B, C, L_out)

    # ---- Fallback (L_out < 128): big row tiles over the flattened (B*C, L) view. ----
    # TODO(synk): a strided HBM->HBM make_async_copy (or folding the chomp into the
    # consumer kernel's BlockSpec) would avoid the masked narrow vst.msk stores here;
    # kept as a simple VMEM copy for robustness.
    max_tr = max(pack, max_block_bytes // (L * itemsize))
    tr = R if R <= max_tr else (max_tr // pack) * pack
    block_bytes = tr * L * itemsize
    vmem_limit = max(16 << 20, 4 * block_bytes + (2 << 20))

    out2 = pl.pallas_call(
        _slice_kernel,
        out_shape=jax.ShapeDtypeStruct((R, L_out), x.dtype),
        grid_spec=pltpu.PrefetchScalarGridSpec(
            num_scalar_prefetch=0,
            grid=(pl.cdiv(R, tr),),
            # Last block dims equal the full array dims, so (8,128) does not apply.
            in_specs=[pl.BlockSpec((tr, L), lambda r: (r, 0))],
            out_specs=pl.BlockSpec((tr, L_out), lambda r: (r, 0)),
        ),
        compiler_params=pltpu.CompilerParams(
            dimension_semantics=("parallel",),
            vmem_limit_bytes=int(vmem_limit),
        ),
        cost_estimate=cost,
    )(x2)
    return out2.reshape(B, C, L_out)


if __name__ == "__main__":
    key = jax.random.PRNGKey(0)
    k1, k2, k3 = jax.random.split(key, 3)

    # 1) Module-sized small shape (B, C, L) = (2, 4, 16), chomp_size=3 (fallback path).
    x1 = jax.random.normal(k1, (2, 4, 16), dtype=jnp.float32)
    y1 = chomp1d(x1, 3)
    jax.block_until_ready(y1)
    assert y1.shape == (2, 4, 13), y1.shape
    assert jnp.array_equal(y1, x1[:, :, :-3]), "fallback-path mismatch"

    # 2) Tiled path: flattened rows, lane axis split for parallel steps, edge masking.
    x2 = jax.random.normal(k2, (2, 4, 512), dtype=jnp.float32)
    y2 = chomp1d(x2, 7)
    jax.block_until_ready(y2)
    assert y2.shape == (2, 4, 505), y2.shape
    assert jnp.array_equal(y2, x2[:, :, :-7]), "tiled-path mismatch"

    # 3) Tiled path with row tiling (tight budget) + edge tile reading past L (masked).
    x3 = jax.random.normal(k3, (2, 16, 640), dtype=jnp.float32)
    y3 = chomp1d(x3, 13, max_block_bytes=16 * 1024)
    jax.block_until_ready(y3)
    assert y3.shape == (2, 16, 627), y3.shape
    assert jnp.array_equal(y3, x3[:, :, :-13]), "row-tiled-path mismatch"

    # 4) chomp_size == 0 identity.
    y4 = chomp1d(x1, 0)
    jax.block_until_ready(y4)
    assert jnp.array_equal(y4, x1), "identity-path mismatch"

    print("KERNEL_OK")
</pallas_src>

<mosaic_0001>
module attributes {stable_mosaic.version = 11 : i64} {
  func.func @_slice_kernel(%arg0: i32, %arg1: memref<8x16xf32, #tpu.memory_space<vmem>>, %arg2: memref<8x13xf32, #tpu.memory_space<vmem>>) attributes {dimension_semantics = [#tpu.dimension_semantics<parallel>], iteration_bounds = array<i64: 1>, scalar_prefetch = 0 : i64, scratch_operands = 0 : i64, tpu.core_type = #tpu.core_type<tc>, window_params = [{transform_indices = @transform_0, window_bounds = array<i64: 8, 16>}, {transform_indices = @transform_1, window_bounds = array<i64: 8, 13>}]} {
    %c0 = arith.constant 0 : index
    %c0_0 = arith.constant 0 : index
    %0 = vector.load %arg1[%c0, %c0_0] : memref<8x16xf32, #tpu.memory_space<vmem>>, vector<8x13xf32>
    %c0_1 = arith.constant 0 : index
    %c0_2 = arith.constant 0 : index
    %1 = vector.load %arg2[%c0_1, %c0_2] : memref<8x13xf32, #tpu.memory_space<vmem>>, vector<8x13xf32>
    tpu.vector_store %arg2[%c0_1, %c0_2], %0 {strides = array<i32>} : memref<8x13xf32, #tpu.memory_space<vmem>>, vector<8x13xf32>,
    return
  }
  func.func @transform_0(%arg0: i32) -> (i32, i32) {
    %c0_i32 = arith.constant 0 : i32
    %c0_i32_0 = arith.constant 0 : i32
    return %arg0, %c0_i32 : i32, i32
  }
  func.func @transform_1(%arg0: i32) -> (i32, i32) {
    %c0_i32 = arith.constant 0 : i32
    %c0_i32_0 = arith.constant 0 : i32
    return %arg0, %c0_i32 : i32, i32
  }
}

</mosaic_0001>

<llo_original>
// kernel: tpu_custom_call.1
$region0: #{tpu_custom_call.1}
  #allocation0 [shape = 'u32[]', space=smem, size = 0x4, offset = 0x4, fixed_abs, tag = 'smem constant byte address 0x4 - core index']
  #allocation1 [shape = 'u32[144,128]{1,0:T(1,128)}', space=vmem, size = 0x12000, scoped, tag = 'internal scratch']
  %s0 = inlined_call_operand.hbm [shape: f32[8,16], index: 0, kind: input, shape index: {}]
  %s1 = inlined_call_operand.hbm [shape: f32[8,13], index: 1, kind: output, shape index: {}]
  %s2 = sld [smem:[#allocation0]]
  $region18: #{tpu_custom_call.1} parent=0
    _
  %s4 = ssub.s32 1, %s2
  %s5 = scalar_select 0, %s4, %s2
  $region1: #{tpu_custom_call.1} parent=0
    #allocation2 [shape = 'u8[4096]{0}', space=vmem, size = 0x1000, scoped, tag = 'input window, operand 0, single buffered']
    #allocation3 [shape = 's32[1]{0}', space=sflag, size = 0x4, scoped, tag = 'scoped memory for tpu_custom_call.1']
    #allocation4 [shape = 's32[1]{0}', space=sflag, size = 0x4, scoped, tag = 'scoped memory for tpu_custom_call.1']
    #allocation5 [shape = 'u8[4096]{0}', space=vmem, size = 0x1000, scoped, tag = 'output window, operand 0, single buffered']
    %6 = vsyncpa [#allocation3], 0
    %7 = vsyncpa [#allocation4], 0
    // Predicated region
    $region2: #{tpu_custom_call.1} parent=1 // pred_check
      _
    $region3: #{tpu_custom_call.1} parent=1 // pred_check_branch
      %9 = sbr.rel (0) target = $region5
    $region4: #{tpu_custom_call.1} parent=1 // pred_region
      %s11 = ssub.s32 128, 128
      %12 = vsyncadd [#allocation3], %s11
      %s14 = sshll.u32 [#allocation2], 4
      %s15 = int_to_ptr.vmem [resolvable:$true] %s14
      %17 = dma.hbm_to_vmem [thread:$0]  %s0, 128, %s15, [#allocation3]
    $region5: #{tpu_custom_call.1} parent=1 // pred_fallthru
      _
    // Predicated region
    $region6: #{tpu_custom_call.1} parent=1 // pred_check
      _
    $region7: #{tpu_custom_call.1} parent=1 // pred_check_branch
      %19 = sbr.rel (0) target = $region9
    $region8: #{tpu_custom_call.1} parent=1 // pred_region
      %20 = dma.done [#allocation3], 128
    $region9: #{tpu_custom_call.1} parent=1 // pred_fallthru
      _
    %v21 = vld [vmem:[#allocation2] sm:$0xff]
    %vm22 = vcmask 105472
    %23 = vst.msk [vmem:[#allocation5] sm:$0xff] %vm22, %v21
    // Predicated region
    $region10: #{tpu_custom_call.1} parent=1 // pred_check
      _
    $region11: #{tpu_custom_call.1} parent=1 // pred_check_branch
      %25 = sbr.rel (0) target = $region13
    $region12: #{tpu_custom_call.1} parent=1 // pred_region
      %s27 = ssub.s32 128, 128
      %28 = vsyncadd [#allocation4], %s27
      %s30 = sshll.u32 [#allocation5], 4
      %s31 = int_to_ptr.vmem [resolvable:$true] %s30
      %33 = dma.vmem_to_hbm [thread:$0]  %s31, 128, %s1, [#allocation4]
    $region13: #{tpu_custom_call.1} parent=1 // pred_fallthru
      _
    // Predicated region
    $region14: #{tpu_custom_call.1} parent=1 // pred_check
      _
    $region15: #{tpu_custom_call.1} parent=1 // pred_check_branch
      %35 = sbr.rel (0) target = $region17
    $region16: #{tpu_custom_call.1} parent=1 // pred_region
      %36 = dma.done [#allocation4], 128
    $region17: #{tpu_custom_call.1} parent=1 // pred_fallthru
      _
    %37 = vsyncpa [#allocation3], 1
    %38 = vsyncpa [#allocation4], 1

</llo_original>
